<compile_context>
chip_gen: v6e
topology: v6e:2x2x1
jax: 0.10.0
libtpu: 0.0.40
codegen_flags: <defaults>
</compile_context>

<pallas_src>
from functools import partial
from typing import List, Sequence

import jax
import jax.numpy as jnp
from jax.experimental import pallas as pl
from jax.experimental.pallas import tpu as pltpu

LN_EPS = 1e-5   # PyTorch nn.LayerNorm default
SUBLANE = 8
MAX_TILE_B = 2048


def _cdiv(a: int, b: int) -> int:
    return -(-a // b)


def _round_up(n: int, m: int) -> int:
    return ((n + m - 1) // m) * m


def _layernorm(x, gamma, beta):
    """Two-pass LayerNorm over the last axis (matches torch.nn.LayerNorm)."""
    mu = jnp.mean(x, axis=-1, keepdims=True)
    xc = x - mu
    var = jnp.mean(xc * xc, axis=-1, keepdims=True)
    return xc * jax.lax.rsqrt(var + LN_EPS) * gamma + beta


def _make_repnet_kernel(num_hidden: int):
    """Builds a kernel for `num_hidden` hidden layers.

    Ref order:
      x, fn_gamma, fn_beta,
      [w_i, b_i, ln_gamma_i, ln_beta_i] * num_hidden,
      w_out, b_out,
      o_ref
    """

    def kernel(*refs):
        x_ref, fng_ref, fnb_ref = refs[0], refs[1], refs[2]
        o_ref = refs[-1]
        hidden_refs = refs[3: 3 + 4 * num_hidden]
        wout_ref, bout_ref = refs[3 + 4 * num_hidden], refs[4 + 4 * num_hidden]

        h = x_ref[...].astype(jnp.float32)
        # feature_norm (LayerNorm over the observation features)
        h = _layernorm(h, fng_ref[...], fnb_ref[...])

        # hidden layers: Linear -> LayerNorm -> ReLU
        # TODO(synk): on v6e/v7x, bf16 dot operands (with f32 accumulation) give
        # ~3x MXU throughput and matter once hidden widths grow; kept f32 here
        # to stay within 1e-4 of the PyTorch reference at these small widths.
        for i in range(num_hidden):
            w_ref, b_ref, g_ref, bt_ref = hidden_refs[4 * i: 4 * i + 4]
            h = (
                jnp.dot(h, w_ref[...], preferred_element_type=jnp.float32)
                + b_ref[...]
            )
            h = _layernorm(h, g_ref[...], bt_ref[...])
            h = jnp.maximum(h, 0.0)  # ReLU

        # output Linear (no LN / activation)
        y = (
            jnp.dot(h, wout_ref[...], preferred_element_type=jnp.float32)
            + bout_ref[...]
        )
        o_ref[...] = y.astype(o_ref.dtype)

    return kernel


def init_representation_params(
    key,
    observation_size: int,
    hidden_state_size: int,
    fc_representation_layers: Sequence[int],
    dtype=jnp.float32,
) -> List[jnp.ndarray]:
    """Parameter init mirroring the PyTorch module's shapes.

    Linear weights: orthogonal init with ReLU gain sqrt(2) (stored [in, out]).
    Linear biases: 0.  LayerNorm: gamma=1, beta=0.
    Vectors are stored as [1, N] so they live as 2-D VMEM tiles.
    """
    gain = jnp.sqrt(2.0)  # nn.init.calculate_gain('relu')
    ortho = jax.nn.initializers.orthogonal(scale=gain)

    params = []
    # feature_norm
    params.append(jnp.ones((1, observation_size), dtype))   # fn_gamma
    params.append(jnp.zeros((1, observation_size), dtype))  # fn_beta

    sizes = [observation_size] + list(fc_representation_layers) + [hidden_state_size]
    keys = jax.random.split(key, len(sizes) - 1)
    for i in range(len(sizes) - 1):
        fan_in, fan_out = sizes[i], sizes[i + 1]
        w = ortho(keys[i], (fan_in, fan_out), dtype)
        b = jnp.zeros((1, fan_out), dtype)
        params.append(w)
        params.append(b)
        if i < len(sizes) - 2:  # hidden layers get LayerNorm params
            params.append(jnp.ones((1, fan_out), dtype))   # ln_gamma
            params.append(jnp.zeros((1, fan_out), dtype))  # ln_beta
    return params


@partial(jax.jit, static_argnames=("num_hidden",))
def representation_network(x, params, *, num_hidden: int):
    """RepresentationNetwork forward pass via a single Pallas kernel.

    The batch is tiled over the grid (>= 2 steps when B > 8 so both v7x
    TensorCores get work); all parameters are pinned to block (0, 0) and stay
    resident in VMEM.  No host-side padding anywhere: ragged last blocks are
    handled by Pallas' masked out-of-bounds stores.
    """
    B, obs = x.shape
    dtype = x.dtype

    hidden_true = [params[2 + 4 * i].shape[1] for i in range(num_hidden)]
    out_true = params[2 + 4 * num_hidden].shape[1]  # w_out is [in, out]

    # Batch tiling.
    if B <= SUBLANE:
        tile_b = B                                    # single full block (== array dim)
    else:
        num_tiles = max(2, _cdiv(B, MAX_TILE_B))      # >= 2 steps for v7x's 2 TCs
        tile_b = min(MAX_TILE_B, _round_up(_cdiv(B, num_tiles), SUBLANE))
    grid_b = _cdiv(B, tile_b)                         # last block may be ragged

    kernel = _make_repnet_kernel(num_hidden)

    in_specs = [pl.BlockSpec((tile_b, obs), lambda i: (i, 0))]
    for p in params:
        r, c = p.shape
        in_specs.append(pl.BlockSpec((r, c), lambda i: (0, 0)))  # pinned, VMEM-resident

    # Modest, computed VMEM ask (well below v7x's 64 MiB physical VMEM).
    itemsize = jnp.dtype(dtype).itemsize
    widths = [obs] + hidden_true + [out_true]
    param_bytes = sum(int(p.size) * itemsize for p in params)
    est = 2 * tile_b * (obs + out_true) * itemsize    # double-buffered I/O tiles
    est += 2 * param_bytes                            # resident parameter buffers
    est += 3 * tile_b * max(widths) * 4               # f32 intermediate headroom
    vmem_limit = int(max(4 << 20, min(32 << 20, 2 * est)))

    out = pl.pallas_call(
        kernel,
        out_shape=jax.ShapeDtypeStruct((B, out_true), dtype),
        grid_spec=pltpu.PrefetchScalarGridSpec(
            num_scalar_prefetch=0,
            grid=(grid_b,),
            in_specs=in_specs,
            out_specs=pl.BlockSpec((tile_b, out_true), lambda i: (i, 0)),
        ),
        compiler_params=pltpu.CompilerParams(
            dimension_semantics=("parallel",),
            vmem_limit_bytes=vmem_limit,
        ),
    )(x, *params)

    return out


def _reference_forward(x, params, num_hidden):
    """Pure-JAX reference (unfused) for correctness checking."""
    fng, fnb = params[0], params[1]
    h = _layernorm(x.astype(jnp.float32), fng, fnb)
    idx = 2
    for _ in range(num_hidden):
        w, b, g, bt = params[idx], params[idx + 1], params[idx + 2], params[idx + 3]
        idx += 4
        h = h @ w + b
        h = _layernorm(h, g, bt)
        h = jnp.maximum(h, 0.0)
    w, b = params[idx], params[idx + 1]
    return h @ w + b


if __name__ == "__main__":
    # Small SMAC-like config.
    observation_size = 32
    hidden_state_size = 32
    fc_representation_layers = [64]
    num_hidden = len(fc_representation_layers)

    key = jax.random.PRNGKey(0)
    key_x, key_x2, key_x3, key_p = jax.random.split(key, 4)

    params = init_representation_params(
        key_p, observation_size, hidden_state_size, fc_representation_layers
    )

    # Case 1: batch = 16 -> two full 8-row grid steps (v7x: one per TensorCore).
    x = jax.random.normal(key_x, (16, observation_size), dtype=jnp.float32)
    out = jax.block_until_ready(
        representation_network(x, params, num_hidden=num_hidden)
    )
    ref = _reference_forward(x, params, num_hidden)
    assert out.shape == (16, hidden_state_size)
    assert jnp.allclose(out, ref, atol=1e-4, rtol=1e-4), "mismatch vs reference (B=16)"

    # Case 2: batch = 10 -> ragged last block (masked OOB stores, no host pad).
    x2 = jax.random.normal(key_x2, (10, observation_size), dtype=jnp.float32)
    out2 = jax.block_until_ready(
        representation_network(x2, params, num_hidden=num_hidden)
    )
    ref2 = _reference_forward(x2, params, num_hidden)
    assert out2.shape == (10, hidden_state_size)
    assert jnp.allclose(out2, ref2, atol=1e-4, rtol=1e-4), "mismatch vs reference (B=10)"

    # Case 3: batch = 2 -> single grid step with block rows == full array dim.
    x3 = jax.random.normal(key_x3, (2, observation_size), dtype=jnp.float32)
    out3 = jax.block_until_ready(
        representation_network(x3, params, num_hidden=num_hidden)
    )
    ref3 = _reference_forward(x3, params, num_hidden)
    assert out3.shape == (2, hidden_state_size)
    assert jnp.allclose(out3, ref3, atol=1e-4, rtol=1e-4), "mismatch vs reference (B=2)"

    print("KERNEL_OK")
</pallas_src>

<mosaic_0001>
module attributes {stable_mosaic.version = 11 : i64} {
  func.func @kernel(%arg0: i32, %arg1: memref<8x32xf32, #tpu.memory_space<vmem>>, %arg2: memref<1x32xf32, #tpu.memory_space<vmem>>, %arg3: memref<1x32xf32, #tpu.memory_space<vmem>>, %arg4: memref<32x64xf32, #tpu.memory_space<vmem>>, %arg5: memref<1x64xf32, #tpu.memory_space<vmem>>, %arg6: memref<1x64xf32, #tpu.memory_space<vmem>>, %arg7: memref<1x64xf32, #tpu.memory_space<vmem>>, %arg8: memref<64x32xf32, #tpu.memory_space<vmem>>, %arg9: memref<1x32xf32, #tpu.memory_space<vmem>>, %arg10: memref<8x32xf32, #tpu.memory_space<vmem>>) attributes {dimension_semantics = [#tpu.dimension_semantics<parallel>], iteration_bounds = array<i64: 2>, scalar_prefetch = 0 : i64, scratch_operands = 0 : i64, tpu.core_type = #tpu.core_type<tc>, window_params = [{transform_indices = @transform_0, window_bounds = array<i64: 8, 32>}, {pipeline_mode = #tpu.pipeline_mode<synchronous>, transform_indices = @transform_1, window_bounds = array<i64: 1, 32>}, {pipeline_mode = #tpu.pipeline_mode<synchronous>, transform_indices = @transform_2, window_bounds = array<i64: 1, 32>}, {pipeline_mode = #tpu.pipeline_mode<synchronous>, transform_indices = @transform_3, window_bounds = array<i64: 32, 64>}, {pipeline_mode = #tpu.pipeline_mode<synchronous>, transform_indices = @transform_4, window_bounds = array<i64: 1, 64>}, {pipeline_mode = #tpu.pipeline_mode<synchronous>, transform_indices = @transform_5, window_bounds = array<i64: 1, 64>}, {pipeline_mode = #tpu.pipeline_mode<synchronous>, transform_indices = @transform_6, window_bounds = array<i64: 1, 64>}, {pipeline_mode = #tpu.pipeline_mode<synchronous>, transform_indices = @transform_7, window_bounds = array<i64: 64, 32>}, {pipeline_mode = #tpu.pipeline_mode<synchronous>, transform_indices = @transform_8, window_bounds = array<i64: 1, 32>}, {transform_indices = @transform_9, window_bounds = array<i64: 8, 32>}]} {
    %c0 = arith.constant 0 : index
    %c0_0 = arith.constant 0 : index
    %0 = vector.load %arg1[%c0, %c0_0] : memref<8x32xf32, #tpu.memory_space<vmem>>, vector<8x32xf32>
    %c0_1 = arith.constant 0 : index
    %c0_2 = arith.constant 0 : index
    %1 = vector.load %arg2[%c0_1, %c0_2] : memref<1x32xf32, #tpu.memory_space<vmem>>, vector<1x32xf32>
    %c0_3 = arith.constant 0 : index
    %c0_4 = arith.constant 0 : index
    %2 = vector.load %arg3[%c0_3, %c0_4] : memref<1x32xf32, #tpu.memory_space<vmem>>, vector<1x32xf32>
    %cst = arith.constant dense<0.000000e+00> : vector<8xf32>
    %3 = vector.multi_reduction <add>, %0, %cst [1] : vector<8x32xf32> to vector<8xf32>
    %4 = vector.shape_cast %3 : vector<8xf32> to vector<8x1xf32>
    %cst_5 = arith.constant 3.200000e+01 : f32
    %5 = vector.broadcast %cst_5 : f32 to vector<8x1xf32>
    %6 = arith.divf %4, %5 : vector<8x1xf32>
    %7 = vector.broadcast %6 : vector<8x1xf32> to vector<8x32xf32>
    %8 = arith.subf %0, %7 : vector<8x32xf32>
    %9 = arith.mulf %8, %8 : vector<8x32xf32>
    %cst_6 = arith.constant dense<0.000000e+00> : vector<8xf32>
    %10 = vector.multi_reduction <add>, %9, %cst_6 [1] : vector<8x32xf32> to vector<8xf32>
    %11 = vector.shape_cast %10 : vector<8xf32> to vector<8x1xf32>
    %cst_7 = arith.constant 3.200000e+01 : f32
    %12 = vector.broadcast %cst_7 : f32 to vector<8x1xf32>
    %13 = arith.divf %11, %12 : vector<8x1xf32>
    %cst_8 = arith.constant 9.99999974E-6 : f32
    %14 = vector.broadcast %cst_8 : f32 to vector<8x1xf32>
    %15 = arith.addf %13, %14 : vector<8x1xf32>
    %16 = math.rsqrt %15 : vector<8x1xf32>
    %17 = vector.broadcast %16 : vector<8x1xf32> to vector<8x32xf32>
    %18 = arith.mulf %8, %17 : vector<8x32xf32>
    %19 = vector.broadcast %1 : vector<1x32xf32> to vector<8x32xf32>
    %20 = arith.mulf %18, %19 : vector<8x32xf32>
    %21 = vector.broadcast %2 : vector<1x32xf32> to vector<8x32xf32>
    %22 = arith.addf %20, %21 : vector<8x32xf32>
    %c0_9 = arith.constant 0 : index
    %c0_10 = arith.constant 0 : index
    %23 = vector.load %arg4[%c0_9, %c0_10] : memref<32x64xf32, #tpu.memory_space<vmem>>, vector<32x64xf32>
    %cst_11 = arith.constant dense<0.000000e+00> : vector<8x64xf32>
    %24 = tpu.matmul %22, %23, %cst_11 {dimension_numbers = #tpu.dot_dimension_numbers<[1], [0], [0], [1], [0, 0, 1, 1], [], []>} : vector<8x32xf32>, vector<32x64xf32>, vector<8x64xf32> -> vector<8x64xf32>
    %c0_12 = arith.constant 0 : index
    %c0_13 = arith.constant 0 : index
    %25 = vector.load %arg5[%c0_12, %c0_13] : memref<1x64xf32, #tpu.memory_space<vmem>>, vector<1x64xf32>
    %26 = vector.broadcast %25 : vector<1x64xf32> to vector<8x64xf32>
    %27 = arith.addf %24, %26 : vector<8x64xf32>
    %c0_14 = arith.constant 0 : index
    %c0_15 = arith.constant 0 : index
    %28 = vector.load %arg6[%c0_14, %c0_15] : memref<1x64xf32, #tpu.memory_space<vmem>>, vector<1x64xf32>
    %c0_16 = arith.constant 0 : index
    %c0_17 = arith.constant 0 : index
    %29 = vector.load %arg7[%c0_16, %c0_17] : memref<1x64xf32, #tpu.memory_space<vmem>>, vector<1x64xf32>
    %cst_18 = arith.constant dense<0.000000e+00> : vector<8xf32>
    %30 = vector.multi_reduction <add>, %27, %cst_18 [1] : vector<8x64xf32> to vector<8xf32>
    %31 = vector.shape_cast %30 : vector<8xf32> to vector<8x1xf32>
    %cst_19 = arith.constant 6.400000e+01 : f32
    %32 = vector.broadcast %cst_19 : f32 to vector<8x1xf32>
    %33 = arith.divf %31, %32 : vector<8x1xf32>
    %34 = vector.broadcast %33 : vector<8x1xf32> to vector<8x64xf32>
    %35 = arith.subf %27, %34 : vector<8x64xf32>
    %36 = arith.mulf %35, %35 : vector<8x64xf32>
    %cst_20 = arith.constant dense<0.000000e+00> : vector<8xf32>
    %37 = vector.multi_reduction <add>, %36, %cst_20 [1] : vector<8x64xf32> to vector<8xf32>
    %38 = vector.shape_cast %37 : vector<8xf32> to vector<8x1xf32>
    %cst_21 = arith.constant 6.400000e+01 : f32
    %39 = vector.broadcast %cst_21 : f32 to vector<8x1xf32>
    %40 = arith.divf %38, %39 : vector<8x1xf32>
    %cst_22 = arith.constant 9.99999974E-6 : f32
    %41 = vector.broadcast %cst_22 : f32 to vector<8x1xf32>
    %42 = arith.addf %40, %41 : vector<8x1xf32>
    %43 = math.rsqrt %42 : vector<8x1xf32>
    %44 = vector.broadcast %43 : vector<8x1xf32> to vector<8x64xf32>
    %45 = arith.mulf %35, %44 : vector<8x64xf32>
    %46 = vector.broadcast %28 : vector<1x64xf32> to vector<8x64xf32>
    %47 = arith.mulf %45, %46 : vector<8x64xf32>
    %48 = vector.broadcast %29 : vector<1x64xf32> to vector<8x64xf32>
    %49 = arith.addf %47, %48 : vector<8x64xf32>
    %cst_23 = arith.constant 0.000000e+00 : f32
    %50 = vector.broadcast %cst_23 : f32 to vector<8x64xf32>
    %51 = arith.maximumf %49, %50 : vector<8x64xf32>
    %c0_24 = arith.constant 0 : index
    %c0_25 = arith.constant 0 : index
    %52 = vector.load %arg8[%c0_24, %c0_25] : memref<64x32xf32, #tpu.memory_space<vmem>>, vector<64x32xf32>
    %cst_26 = arith.constant dense<0.000000e+00> : vector<8x32xf32>
    %53 = tpu.matmul %51, %52, %cst_26 {dimension_numbers = #tpu.dot_dimension_numbers<[1], [0], [0], [1], [0, 0, 1, 1], [], []>} : vector<8x64xf32>, vector<64x32xf32>, vector<8x32xf32> -> vector<8x32xf32>
    %c0_27 = arith.constant 0 : index
    %c0_28 = arith.constant 0 : index
    %54 = vector.load %arg9[%c0_27, %c0_28] : memref<1x32xf32, #tpu.memory_space<vmem>>, vector<1x32xf32>
    %55 = vector.broadcast %54 : vector<1x32xf32> to vector<8x32xf32>
    %56 = arith.addf %53, %55 : vector<8x32xf32>
    %c0_29 = arith.constant 0 : index
    %c0_30 = arith.constant 0 : index
    %57 = vector.load %arg10[%c0_29, %c0_30] : memref<8x32xf32, #tpu.memory_space<vmem>>, vector<8x32xf32>
    tpu.vector_store %arg10[%c0_29, %c0_30], %56 {strides = array<i32>} : memref<8x32xf32, #tpu.memory_space<vmem>>, vector<8x32xf32>,
    return
  }
  func.func @transform_0(%arg0: i32) -> (i32, i32) {
    %c0_i32 = arith.constant 0 : i32
    %c0_i32_0 = arith.constant 0 : i32
    return %arg0, %c0_i32 : i32, i32
  }
  func.func @transform_1(%arg0: i32) -> (i32, i32) {
    %c0_i32 = arith.constant 0 : i32
    %c0_i32_0 = arith.constant 0 : i32
    %c0_i32_1 = arith.constant 0 : i32
    return %c0_i32, %c0_i32_0 : i32, i32
  }
  func.func @transform_2(%arg0: i32) -> (i32, i32) {
    %c0_i32 = arith.constant 0 : i32
    %c0_i32_0 = arith.constant 0 : i32
    %c0_i32_1 = arith.constant 0 : i32
    return %c0_i32, %c0_i32_0 : i32, i32
  }
  func.func @transform_3(%arg0: i32) -> (i32, i32) {
    %c0_i32 = arith.constant 0 : i32
    %c0_i32_0 = arith.constant 0 : i32
    %c0_i32_1 = arith.constant 0 : i32
    return %c0_i32, %c0_i32_0 : i32, i32
  }
  func.func @transform_4(%arg0: i32) -> (i32, i32) {
    %c0_i32 = arith.constant 0 : i32
    %c0_i32_0 = arith.constant 0 : i32
    %c0_i32_1 = arith.constant 0 : i32
    return %c0_i32, %c0_i32_0 : i32, i32
  }
  func.func @transform_5(%arg0: i32) -> (i32, i32) {
    %c0_i32 = arith.constant 0 : i32
    %c0_i32_0 = arith.constant 0 : i32
    %c0_i32_1 = arith.constant 0 : i32
    return %c0_i32, %c0_i32_0 : i32, i32
  }
  func.func @transform_6(%arg0: i32) -> (i32, i32) {
    %c0_i32 = arith.constant 0 : i32
    %c0_i32_0 = arith.constant 0 : i32
    %c0_i32_1 = arith.constant 0 : i32
    return %c0_i32, %c0_i32_0 : i32, i32
  }
  func.func @transform_7(%arg0: i32) -> (i32, i32) {
    %c0_i32 = arith.constant 0 : i32
    %c0_i32_0 = arith.constant 0 : i32
    %c0_i32_1 = arith.constant 0 : i32
    return %c0_i32, %c0_i32_0 : i32, i32
  }
  func.func @transform_8(%arg0: i32) -> (i32, i32) {
    %c0_i32 = arith.constant 0 : i32
    %c0_i32_0 = arith.constant 0 : i32
    %c0_i32_1 = arith.constant 0 : i32
    return %c0_i32, %c0_i32_0 : i32, i32
  }
  func.func @transform_9(%arg0: i32) -> (i32, i32) {
    %c0_i32 = arith.constant 0 : i32
    %c0_i32_0 = arith.constant 0 : i32
    return %arg0, %c0_i32 : i32, i32
  }
}

</mosaic_0001>

<llo_original>
// kernel: representation_network.1
$region0: #{representation_network.1}
  #allocation0 [shape = 'u32[]', space=smem, size = 0x4, offset = 0x4, fixed_abs, tag = 'smem constant byte address 0x4 - core index']
  #allocation1 [shape = 'u32[144,128]{1,0:T(1,128)}', space=vmem, size = 0x12000, scoped, tag = 'internal scratch']
  %s0 = inlined_call_operand.vmem [shape: f32[16,32], index: 0, kind: input, shape index: {}]
  %s1 = inlined_call_operand.vmem [shape: f32[1,32], index: 1, kind: input, shape index: {}]
  %s2 = inlined_call_operand.vmem [shape: f32[1,32], index: 2, kind: input, shape index: {}]
  %s3 = inlined_call_operand.vmem [shape: f32[32,64], index: 3, kind: input, shape index: {}]
  %s4 = inlined_call_operand.vmem [shape: f32[1,64], index: 4, kind: input, shape index: {}]
  %s5 = inlined_call_operand.vmem [shape: f32[1,64], index: 5, kind: input, shape index: {}]
  %s6 = inlined_call_operand.vmem [shape: f32[1,64], index: 6, kind: input, shape index: {}]
  %s7 = inlined_call_operand.vmem [shape: f32[64,32], index: 7, kind: input, shape index: {}]
  %s8 = inlined_call_operand.vmem [shape: f32[1,32], index: 8, kind: input, shape index: {}]
  %s9 = inlined_call_operand.hbm [shape: f32[16,32], index: 9, kind: output, shape index: {}]
  %s10 = sld [smem:[#allocation0]]
  $region69: #{representation_network.1} parent=0
    _
  %s12 = ssub.s32 1, %s10
  %s13 = scalar_select 0, %s12, %s10
  $region1: #{representation_network.1} parent=0
    #allocation2 [shape = 'u8[8192]{0}', space=vmem, size = 0x2000, scoped, tag = 'output window, operand 0']
    #allocation3 [shape = 's32[2]{0}', space=sflag, size = 0x8, scoped, tag = 'scoped memory for representation_network.1']
    %14 = vsyncpa [#allocation3], 0
    %s15 = scalar_lea.sflag [#allocation3], 1
    %16 = vsyncpa %s15, 0
    loop: start=0, step=1, limit=4
    $region2: #{representation_network.1} parent=1 // loop_pre_header
      _
    $region3: #{representation_network.1} parent=1 // loop_header
      %s18 = sphi 0, %s22
      %p19 = scmp.ge.s32.totalorder %s18, 4
      %s28 = sphi 0, %s30
      %s31 = sphi 0, %s28
      %s32 = sphi 0, %s31
      %s48 = sphi 0, %s32
      %s52 = sphi 0, %s52
      %s54 = sphi 0, %s52
      %s55 = sphi 0, %s54
      %s69 = sphi 0, %s55
      %s73 = sphi 0, %s73
      %s75 = sphi 0, %s73
      %s76 = sphi 0, %s75
      %s90 = sphi 0, %s76
      %s94 = sphi 0, %s94
      %s96 = sphi 0, %s94
      %s97 = sphi 0, %s96
      %s111 = sphi 0, %s97
      %s115 = sphi 0, %s115
      %s117 = sphi 0, %s115
      %s118 = sphi 0, %s117
      %s132 = sphi 0, %s118
      %s136 = sphi 0, %s136
      %s138 = sphi 0, %s136
      %s139 = sphi 0, %s138
      %s153 = sphi 0, %s139
      %s157 = sphi 0, %s157
      %s159 = sphi 0, %s157
      %s160 = sphi 0, %s159
      %s174 = sphi 0, %s160
      %s178 = sphi 0, %s178
      %s180 = sphi 0, %s178
      %s181 = sphi 0, %s180
      %s195 = sphi 0, %s181
      %s199 = sphi 0, %s199
      %s201 = sphi 0, %s199
      %s202 = sphi 0, %s201
      %s216 = sphi 0, %s202
      %s222 = sphi 0, %s224
      %s225 = sphi 0, %s222
      %s226 = sphi 0, %s225
      %s242 = sphi 0, %s226
    $region4: #{representation_network.1} parent=1 // loop_header_branch
      %21 = sbr.rel (%p19) target = $region8
    $region5: #{representation_network.1} parent=1 // loop_body
      %s23 = ssub.s32 %s18, 1
      %s24 = ssub.s32 %s18, 2
      %s25 = sadd.s32 %s18, 1
      %s26 = ssub.s32 %s18, %s25
      %p27 = scmp.eq.s32.totalorder %s26, 0
      %s29 = sadd.s32 %s28, 1
      %s30 = scalar_select %p27, %s28, %s29
      %p33 = pneg %p27
      %p34 = scmp.eq.s32.totalorder %s18, 1
      %p35 = por %p33, %p34
      %p36 = scmp.ne.s32.totalorder %s28, %s31
      %p37 = scmp.eq.s32.totalorder %s18, 0
      %p38 = por %p36, %p37
      %p39 = scmp.ne.s32.totalorder %s28, %s31
      %p40 = scmp.eq.s32.totalorder %s23, 1
      %p41 = por %p39, %p40
      %p42 = scmp.ne.s32.totalorder %s31, %s32
      %p43 = scmp.eq.s32.totalorder %s23, 0
      %p44 = por %p42, %p43
      %p45 = scmp.ne.s32.totalorder %s31, %s32
      %p46 = scmp.eq.s32.totalorder %s24, 1
      %p47 = por %p45, %p46
      %p49 = scmp.ne.s32.totalorder %s32, %s48
      %p50 = scmp.eq.s32.totalorder %s24, 0
      %p51 = por %p49, %p50
      %s53 = sadd.s32 %s52, 1
      %p56 = scmp.eq.s32.totalorder %s18, 1
      %p57 = scmp.ne.s32.totalorder %s52, %s54
      %p58 = scmp.eq.s32.totalorder %s18, 0
      %p59 = por %p57, %p58
      %p60 = scmp.ne.s32.totalorder %s52, %s54
      %p61 = scmp.eq.s32.totalorder %s23, 1
      %p62 = por %p60, %p61
      %p63 = scmp.ne.s32.totalorder %s54, %s55
      %p64 = scmp.eq.s32.totalorder %s23, 0
      %p65 = por %p63, %p64
      %p66 = scmp.ne.s32.totalorder %s54, %s55
      %p67 = scmp.eq.s32.totalorder %s24, 1
      %p68 = por %p66, %p67
      %p70 = scmp.ne.s32.totalorder %s55, %s69
      %p71 = scmp.eq.s32.totalorder %s24, 0
      %p72 = por %p70, %p71
      %s74 = sadd.s32 %s73, 1
      %p77 = scmp.eq.s32.totalorder %s18, 1
      %p78 = scmp.ne.s32.totalorder %s73, %s75
      %p79 = scmp.eq.s32.totalorder %s18, 0
      %p80 = por %p78, %p79
      %p81 = scmp.ne.s32.totalorder %s73, %s75
      %p82 = scmp.eq.s32.totalorder %s23, 1
      %p83 = por %p81, %p82
      %p84 = scmp.ne.s32.totalorder %s75, %s76
      %p85 = scmp.eq.s32.totalorder %s23, 0
      %p86 = por %p84, %p85
      %p87 = scmp.ne.s32.totalorder %s75, %s76
      %p88 = scmp.eq.s32.totalorder %s24, 1
      %p89 = por %p87, %p88
      %p91 = scmp.ne.s32.totalorder %s76, %s90
      %p92 = scmp.eq.s32.totalorder %s24, 0
      %p93 = por %p91, %p92
      %s95 = sadd.s32 %s94, 1
      %p98 = scmp.eq.s32.totalorder %s18, 1
      %p99 = scmp.ne.s32.totalorder %s94, %s96
      %p100 = scmp.eq.s32.totalorder %s18, 0
      %p101 = por %p99, %p100
      %p102 = scmp.ne.s32.totalorder %s94, %s96
      %p103 = scmp.eq.s32.totalorder %s23, 1
      %p104 = por %p102, %p103
      %p105 = scmp.ne.s32.totalorder %s96, %s97
      %p106 = scmp.eq.s32.totalorder %s23, 0
      %p107 = por %p105, %p106
      %p108 = scmp.ne.s32.totalorder %s96, %s97
      %p109 = scmp.eq.s32.totalorder %s24, 1
      %p110 = por %p108, %p109
      %p112 = scmp.ne.s32.totalorder %s97, %s111
      %p113 = scmp.eq.s32.totalorder %s24, 0
      %p114 = por %p112, %p113
      %s116 = sadd.s32 %s115, 1
      %p119 = scmp.eq.s32.totalorder %s18, 1
      %p120 = scmp.ne.s32.totalorder %s115, %s117
      %p121 = scmp.eq.s32.totalorder %s18, 0
      %p122 = por %p120, %p121
      %p123 = scmp.ne.s32.totalorder %s115, %s117
      %p124 = scmp.eq.s32.totalorder %s23, 1
      %p125 = por %p123, %p124
      %p126 = scmp.ne.s32.totalorder %s117, %s118
      %p127 = scmp.eq.s32.totalorder %s23, 0
      %p128 = por %p126, %p127
      %p129 = scmp.ne.s32.totalorder %s117, %s118
      %p130 = scmp.eq.s32.totalorder %s24, 1
      %p131 = por %p129, %p130
      %p133 = scmp.ne.s32.totalorder %s118, %s132
      %p134 = scmp.eq.s32.totalorder %s24, 0
      %p135 = por %p133, %p134
      %s137 = sadd.s32 %s136, 1
      %p140 = scmp.eq.s32.totalorder %s18, 1
      %p141 = scmp.ne.s32.totalorder %s136, %s138
      %p142 = scmp.eq.s32.totalorder %s18, 0
      %p143 = por %p141, %p142
      %p144 = scmp.ne.s32.totalorder %s136, %s138
      %p145 = scmp.eq.s32.totalorder %s23, 1
      %p146 = por %p144, %p145
      %p147 = scmp.ne.s32.totalorder %s138, %s139
      %p148 = scmp.eq.s32.totalorder %s23, 0
      %p149 = por %p147, %p148
      %p150 = scmp.ne.s32.totalorder %s138, %s139
      %p151 = scmp.eq.s32.totalorder %s24, 1
      %p152 = por %p150, %p151
      %p154 = scmp.ne.s32.totalorder %s139, %s153
      %p155 = scmp.eq.s32.totalorder %s24, 0
      %p156 = por %p154, %p155
      %s158 = sadd.s32 %s157, 1
      %p161 = scmp.eq.s32.totalorder %s18, 1
      %p162 = scmp.ne.s32.totalorder %s157, %s159
      %p163 = scmp.eq.s32.totalorder %s18, 0
      %p164 = por %p162, %p163
      %p165 = scmp.ne.s32.totalorder %s157, %s159
      %p166 = scmp.eq.s32.totalorder %s23, 1
      %p167 = por %p165, %p166
      %p168 = scmp.ne.s32.totalorder %s159, %s160
      %p169 = scmp.eq.s32.totalorder %s23, 0
      %p170 = por %p168, %p169
      %p171 = scmp.ne.s32.totalorder %s159, %s160
      %p172 = scmp.eq.s32.totalorder %s24, 1
      %p173 = por %p171, %p172
      %p175 = scmp.ne.s32.totalorder %s160, %s174
      %p176 = scmp.eq.s32.totalorder %s24, 0
      %p177 = por %p175, %p176
      %s179 = sadd.s32 %s178, 1
      %p182 = scmp.eq.s32.totalorder %s18, 1
      %p183 = scmp.ne.s32.totalorder %s178, %s180
      %p184 = scmp.eq.s32.totalorder %s18, 0
      %p185 = por %p183, %p184
      %p186 = scmp.ne.s32.totalorder %s178, %s180
      %p187 = scmp.eq.s32.totalorder %s23, 1
      %p188 = por %p186, %p187
      %p189 = scmp.ne.s32.totalorder %s180, %s181
      %p190 = scmp.eq.s32.totalorder %s23, 0
      %p191 = por %p189, %p190
      %p192 = scmp.ne.s32.totalorder %s180, %s181
      %p193 = scmp.eq.s32.totalorder %s24, 1
      %p194 = por %p192, %p193
      %p196 = scmp.ne.s32.totalorder %s181, %s195
      %p197 = scmp.eq.s32.totalorder %s24, 0
      %p198 = por %p196, %p197
      %s200 = sadd.s32 %s199, 1
      %p203 = scmp.eq.s32.totalorder %s18, 1
      %p204 = scmp.ne.s32.totalorder %s199, %s201
      %p205 = scmp.eq.s32.totalorder %s18, 0
      %p206 = por %p204, %p205
      %p207 = scmp.ne.s32.totalorder %s199, %s201
      %p208 = scmp.eq.s32.totalorder %s23, 1
      %p209 = por %p207, %p208
      %p210 = scmp.ne.s32.totalorder %s201, %s202
      %p211 = scmp.eq.s32.totalorder %s23, 0
      %p212 = por %p210, %p211
      %p213 = scmp.ne.s32.totalorder %s201, %s202
      %p214 = scmp.eq.s32.totalorder %s24, 1
      %p215 = por %p213, %p214
      %p217 = scmp.ne.s32.totalorder %s202, %s216
      %p218 = scmp.eq.s32.totalorder %s24, 0
      %p219 = por %p217, %p218
      %s220 = ssub.s32 %s18, %s25
      %p221 = scmp.eq.s32.totalorder %s220, 0
      %s223 = sadd.s32 %s222, 1
      %s224 = scalar_select %p221, %s222, %s223
      %p227 = pneg %p221
      %p228 = scmp.eq.s32.totalorder %s18, 1
      %p229 = por %p227, %p228
      %p230 = scmp.ne.s32.totalorder %s222, %s225
      %p231 = scmp.eq.s32.totalorder %s18, 0
      %p232 = por %p230, %p231
      %p233 = scmp.ne.s32.totalorder %s222, %s225
      %p234 = scmp.eq.s32.totalorder %s23, 1
      %p235 = por %p233, %p234
      %p236 = scmp.ne.s32.totalorder %s225, %s226
      %p237 = scmp.eq.s32.totalorder %s23, 0
      %p238 = por %p236, %p237
      %p239 = scmp.ne.s32.totalorder %s225, %s226
      %p240 = scmp.eq.s32.totalorder %s24, 1
      %p241 = por %p239, %p240
      %p243 = scmp.ne.s32.totalorder %s226, %s242
      %p244 = scmp.eq.s32.totalorder %s24, 0
      %p245 = por %p243, %p244
      %p246 = scmp.le.s32.totalorder 1, %s18
      %p247 = scmp.lt.s32.totalorder %s18, 3
      %p248 = pnand %p246, %p247
      %p249 = pneg %p248
      // Predicated region
      $region9: #{representation_network.1} parent=5 // pred_check
        _
      $region10: #{representation_network.1} parent=5 // pred_check_branch
        %251 = sbr.rel (%p248) target = $region12
      $region11: #{representation_network.1} parent=5 // pred_region
        %s252 = ssub.s32 %s18, 1
        // Predicated region
        $region13: #{representation_network.1} parent=11 // pred_check
          %p253 = pneg %p65
        $region14: #{representation_network.1} parent=11 // pred_check_branch
          %255 = sbr.rel (%p253) target = $region16
        $region15: #{representation_network.1} parent=11 // pred_region
          _
        $region16: #{representation_network.1} parent=11 // pred_fallthru
          _
        // Predicated region
        $region17: #{representation_network.1} parent=11 // pred_check
          %p256 = pneg %p86
        $region18: #{representation_network.1} parent=11 // pred_check_branch
          %258 = sbr.rel (%p256) target = $region20
        $region19: #{representation_network.1} parent=11 // pred_region
          _
        $region20: #{representation_network.1} parent=11 // pred_fallthru
          _
        // Predicated region
        $region21: #{representation_network.1} parent=11 // pred_check
          %p259 = pneg %p107
        $region22: #{representation_network.1} parent=11 // pred_check_branch
          %261 = sbr.rel (%p259) target = $region24
        $region23: #{representation_network.1} parent=11 // pred_region
          _
        $region24: #{representation_network.1} parent=11 // pred_fallthru
          _
        // Predicated region
        $region25: #{representation_network.1} parent=11 // pred_check
          %p262 = pneg %p128
        $region26: #{representation_network.1} parent=11 // pred_check_branch
          %264 = sbr.rel (%p262) target = $region28
        $region27: #{representation_network.1} parent=11 // pred_region
          _
        $region28: #{representation_network.1} parent=11 // pred_fallthru
          _
        // Predicated region
        $region29: #{representation_network.1} parent=11 // pred_check
          %p265 = pneg %p149
        $region30: #{representation_network.1} parent=11 // pred_check_branch
          %267 = sbr.rel (%p265) target = $region32
        $region31: #{representation_network.1} parent=11 // pred_region
          _
        $region32: #{representation_network.1} parent=11 // pred_fallthru
          _
        // Predicated region
        $region33: #{representation_network.1} parent=11 // pred_check
          %p268 = pneg %p170
        $region34: #{representation_network.1} parent=11 // pred_check_branch
          %270 = sbr.rel (%p268) target = $region36
        $region35: #{representation_network.1} parent=11 // pred_region
          _
        $region36: #{representation_network.1} parent=11 // pred_fallthru
          _
        // Predicated region
        $region37: #{representation_network.1} parent=11 // pred_check
          %p271 = pneg %p191
        $region38: #{representation_network.1} parent=11 // pred_check_branch
          %273 = sbr.rel (%p271) target = $region40
        $region39: #{representation_network.1} parent=11 // pred_region
          _
        $region40: #{representation_network.1} parent=11 // pred_fallthru
          _
        // Predicated region
        $region41: #{representation_network.1} parent=11 // pred_check
          %p274 = pneg %p212
        $region42: #{representation_network.1} parent=11 // pred_check_branch
          %276 = sbr.rel (%p274) target = $region44
        $region43: #{representation_network.1} parent=11 // pred_region
          _
        $region44: #{representation_network.1} parent=11 // pred_fallthru
          _
      $region12: #{representation_network.1} parent=5 // pred_fallthru
        _
      %p277 = scmp.lt.s32.totalorder %s18, 2
      // Predicated region
      $region45: #{representation_network.1} parent=5 // pred_check
        %p278 = pneg %p277
      $region46: #{representation_network.1} parent=5 // pred_check_branch
        %280 = sbr.rel (%p278) target = $region48
      $region47: #{representation_network.1} parent=5 // pred_region
        // Predicated region
        $region49: #{representation_network.1} parent=47 // pred_check
          %p281 = pneg %p38
        $region50: #{representation_network.1} parent=47 // pred_check_branch
          %283 = sbr.rel (%p281) target = $region52
        $region51: #{representation_network.1} parent=47 // pred_region
          %p284 = scmp.lt.s32.totalorder %s18, 1
          %s285 = scalar_select %p284, %s18, 1
          %s286 = smul.addr %s285, 8
          %s287 = scalar_lea.vmem %s0, %s286
        $region52: #{representation_network.1} parent=47 // pred_fallthru
          _
      $region48: #{representation_network.1} parent=5 // pred_fallthru
        _
      %p288 = scmp.le.s32.totalorder 1, %s18
      %p289 = scmp.lt.s32.totalorder %s18, 3
      %p290 = pnand %p288, %p289
      %p291 = pneg %p290
      // Predicated region
      $region53: #{representation_network.1} parent=5 // pred_check
        _
      $region54: #{representation_network.1} parent=5 // pred_check_branch
        %293 = sbr.rel (%p290) target = $region56
      $region55: #{representation_network.1} parent=5 // pred_region
        %s294 = ssub.s32 %s18, 1
        %p295 = scmp.lt.s32.totalorder %s23, 1
        %s296 = scalar_select %p295, %s23, 1
        %s297 = smul.addr %s296, 8
        %s298 = scalar_lea.vmem %s0, %s297
        %p299 = pneg %p44
        %p300 = pneg %p41
        %p301 = pneg %p65
        %p302 = pneg %p62
        %p303 = pneg %p86
        %p304 = pneg %p83
        %p305 = pneg %p107
        %p306 = pneg %p104
        %p307 = pneg %p128
        %p308 = pneg %p125
        %p309 = pneg %p149
        %p310 = pneg %p146
        %p311 = pneg %p170
        %p312 = pneg %p167
        %p313 = pneg %p191
        %p314 = pneg %p188
        %p315 = pneg %p212
        %p316 = pneg %p209
        %p317 = pneg %p238
        %p318 = pneg %p235
        %s319 = sand.u32 %s225, 1
        %s320 = scalar_lea.sflag [#allocation3], %s319
        %s321 = sand.u32 %s225, 1
        %s322 = smul.addr %s321, 8
        %s323 = scalar_lea.vmem [#allocation2], %s322
        %p324 = scmp.lt.s32.totalorder %s23, 1
        %s325 = scalar_select %p324, %s23, 1
        %s326 = smul.addr %s325, 8
        %s327 = scalar_lea.vmem %s0, %s326
        %v328 = vld [vmem:[%s327] sm:$0xff]
        %v329 = vld [vmem:[%s1] sm:$0x1]
        %v330 = vld [vmem:[%s2] sm:$0x1]
        %vm331 = vcmask 261120
        %v332 = vsel %vm331, %v328, 0.0
        %333 = vadd.xlane.f32.xlu0 %v332
        %v334 = vpop.xlane.xlu0 %333
        %v335 = vrcp.pop 32.0
        %v336 = vmul.f32 %v334, %v335
        %v337 = vsub.f32 %v328, %v336
        %v338 = vmul.f32 %v337, %v337
        %v339 = vsel %vm331, %v338, 0.0
        %340 = vadd.xlane.f32.xlu0 %v339
        %v341 = vpop.xlane.xlu0 %340
        %v342 = vmul.f32 %v341, %v335
        %v343 = vadd.f32 %v342, 1e-05
        %v344 = vrsqrt.pop %v343
        %v345 = vmul.f32 %v337, %v344
        %v347 = vlaneseq
        %v348 = vshrl.u32 %v347, 7
        %v349 = vsub.s32 0, %v348
        %v350 = vrot.slane %v329, %v349
        %v352 = vmul.f32 %v345, %v350
        %v354 = vlaneseq
        %v355 = vshrl.u32 %v354, 7
        %v356 = vsub.s32 0, %v355
        %v357 = vrot.slane %v330, %v356
        %v359 = vadd.f32 %v352, %v357
        %v360 = vld [vmem:[%s3] sm:$0xff]
        %v361 = vld [vmem:[%s3 + $0x8] sm:$0xff]
        %v362 = vld [vmem:[%s3 + $0x10] sm:$0xff]
        %v363 = vld [vmem:[%s3 + $0x18] sm:$0xff]
        %v364 = vld [vmem:[%s4] sm:$0x1]
        %v366 = vlaneseq
        %v367 = vshrl.u32 %v366, 7
        %v368 = vsub.s32 0, %v367
        %v369 = vrot.slane %v364, %v368
        %v372 = vsel %vm331, %v359, 0
        %374 = vmatprep.subr.mxu0 0.0
        %375 = vmatpush1.msra.mxu0 0.0
        %376 = vmatprep.subr.mxu0 0.0
        %377 = vmatpush1.msra.mxu0 0.0
        %378 = vmatprep.subr.mxu0 0.0
        %379 = vmatpush1.msra.mxu0 0.0
        %380 = vmatprep.subr.mxu0 0.0
        %381 = vmatpush1.msra.mxu0 0.0
        %382 = vmatprep.subr.mxu0 0.0
        %383 = vmatpush1.msra.mxu0 0.0
        %384 = vmatprep.subr.mxu0 0.0
        %385 = vmatpush1.msra.mxu0 0.0
        %386 = vmatprep.subr.mxu0 0.0
        %387 = vmatpush1.msra.mxu0 0.0
        %388 = vmatprep.subr.mxu0 0.0
        %389 = vmatpush1.msra.mxu0 0.0
        %390 = vmatprep.subr.mxu0 0.0
        %391 = vmatpush1.msra.mxu0 0.0
        %392 = vmatprep.subr.mxu0 0.0
        %393 = vmatpush1.msra.mxu0 0.0
        %394 = vmatprep.subr.mxu0 0.0
        %395 = vmatpush1.msra.mxu0 0.0
        %396 = vmatprep.subr.mxu0 0.0
        %397 = vmatpush1.msra.mxu0 0.0
        %398 = vmatprep.subr.mxu0 0.0
        %399 = vmatpush1.msra.mxu0 %v363
        %400 = vmatprep.subr.mxu0 0.0
        %401 = vmatpush1.msra.mxu0 %v362
        %402 = vmatprep.subr.mxu0 0.0
        %403 = vmatpush1.msra.mxu0 %v361
        %404 = vmatprep.subr.mxu0 0.0
        %405 = vmatpush1.msra.mxu0 %v360
        %406 = vmatprep.subr.mxu0 0.0
        %407 = vmatpush2.msra.mxu0 0.0
        %408 = vmatprep.subr.mxu0 0.0
        %409 = vmatpush2.msra.mxu0 0.0
        %410 = vmatprep.subr.mxu0 0.0
        %411 = vmatpush2.msra.mxu0 0.0
        %412 = vmatprep.subr.mxu0 0.0
        %413 = vmatpush2.msra.mxu0 0.0
        %414 = vmatprep.subr.mxu0 0.0
        %415 = vmatpush2.msra.mxu0 0.0
        %416 = vmatprep.subr.mxu0 0.0
        %417 = vmatpush2.msra.mxu0 0.0
        %418 = vmatprep.subr.mxu0 0.0
        %419 = vmatpush2.msra.mxu0 0.0
        %420 = vmatprep.subr.mxu0 0.0
        %421 = vmatpush2.msra.mxu0 0.0
        %422 = vmatprep.subr.mxu0 0.0
        %423 = vmatpush2.msra.mxu0 0.0
        %424 = vmatprep.subr.mxu0 0.0
        %425 = vmatpush2.msra.mxu0 0.0
        %426 = vmatprep.subr.mxu0 0.0
        %427 = vmatpush2.msra.mxu0 0.0
        %428 = vmatprep.subr.mxu0 0.0
        %429 = vmatpush2.msra.mxu0 0.0
        %430 = vmatprep.subr.mxu0 0.0
        %431 = vmatpush2.msra.mxu0 0.0
        %432 = vmatprep.subr.mxu0 0.0
        %433 = vmatpush2.msra.mxu0 0.0
        %434 = vmatprep.subr.mxu0 0.0
        %435 = vmatpush2.msra.mxu0 0.0
        %436 = vmatprep.subr.mxu0 0.0
        %437 = vmatpush2.msra.mxu0 0.0
        %438 = vmatprep.mubr.f32.mxu0 0.0
        %439 = vmatmul.mubr.f32.gmra.mxu0 %v372
        %v440 = vpop.f32.mrf.mxu0
        %v441 = vadd.f32 %v369, %v440
        %v442 = vpop.f32.mrf.mxu0
        %443 = vdwg.mxu0
        %v444 = vld [vmem:[%s5] sm:$0x1]
        %v445 = vld [vmem:[%s6] sm:$0x1]
        %vm446 = vcmask 523264
        %v447 = vsel %vm446, %v441, 0.0
        %448 = vadd.xlane.f32.xlu0 %v447
        %v449 = vpop.xlane.xlu0 %448
        %v450 = vrcp.pop 64.0
        %v451 = vmul.f32 %v449, %v450
        %v452 = vsub.f32 %v441, %v451
        %v453 = vmul.f32 %v452, %v452
        %v454 = vsel %vm446, %v453, 0.0
        %455 = vadd.xlane.f32.xlu0 %v454
        %v456 = vpop.xlane.xlu0 %455
        %v457 = vmul.f32 %v456, %v450
        %v458 = vadd.f32 %v457, 1e-05
        %v459 = vrsqrt.pop %v458
        %v460 = vmul.f32 %v452, %v459
        %v462 = vlaneseq
        %v463 = vshrl.u32 %v462, 7
        %v464 = vsub.s32 0, %v463
        %v465 = vrot.slane %v444, %v464
        %v467 = vmul.f32 %v460, %v465
        %v469 = vlaneseq
        %v470 = vshrl.u32 %v469, 7
        %v471 = vsub.s32 0, %v470
        %v472 = vrot.slane %v445, %v471
        %v474 = vadd.f32 %v467, %v472
        %v475 = vmax.f32 %v474, 0.0
        %v476 = vld [vmem:[%s7] sm:$0xff]
        %v477 = vld [vmem:[%s7 + $0x8] sm:$0xff]
        %v478 = vld [vmem:[%s7 + $0x10] sm:$0xff]
        %v479 = vld [vmem:[%s7 + $0x18] sm:$0xff]
        %v480 = vld [vmem:[%s7 + $0x20] sm:$0xff]
        %v481 = vld [vmem:[%s7 + $0x28] sm:$0xff]
        %v482 = vld [vmem:[%s7 + $0x30] sm:$0xff]
        %v483 = vld [vmem:[%s7 + $0x38] sm:$0xff]
        %v484 = vld [vmem:[%s8] sm:$0x1]
        %v486 = vlaneseq
        %v487 = vshrl.u32 %v486, 7
        %v488 = vsub.s32 0, %v487
        %v489 = vrot.slane %v484, %v488
        %v492 = vsel %vm446, %v475, 0
        %494 = vmatprep.subr.mxu0 0.0
        %495 = vmatpush1.msra.mxu0 0.0
        %496 = vmatprep.subr.mxu0 0.0
        %497 = vmatpush1.msra.mxu0 0.0
        %498 = vmatprep.subr.mxu0 0.0
        %499 = vmatpush1.msra.mxu0 0.0
        %500 = vmatprep.subr.mxu0 0.0
        %501 = vmatpush1.msra.mxu0 0.0
        %502 = vmatprep.subr.mxu0 0.0
        %503 = vmatpush1.msra.mxu0 0.0
        %504 = vmatprep.subr.mxu0 0.0
        %505 = vmatpush1.msra.mxu0 0.0
        %506 = vmatprep.subr.mxu0 0.0
        %507 = vmatpush1.msra.mxu0 0.0
        %508 = vmatprep.subr.mxu0 0.0
        %509 = vmatpush1.msra.mxu0 0.0
        %510 = vmatprep.subr.mxu0 0.0
        %511 = vmatpush1.msra.mxu0 %v483
        %512 = vmatprep.subr.mxu0 0.0
        %513 = vmatpush1.msra.mxu0 %v482
        %514 = vmatprep.subr.mxu0 0.0
        %515 = vmatpush1.msra.mxu0 %v481
        %516 = vmatprep.subr.mxu0 0.0
        %517 = vmatpush1.msra.mxu0 %v480
        %518 = vmatprep.subr.mxu0 0.0
        %519 = vmatpush1.msra.mxu0 %v479
        %520 = vmatprep.subr.mxu0 0.0
        %521 = vmatpush1.msra.mxu0 %v478
        %522 = vmatprep.subr.mxu0 0.0
        %523 = vmatpush1.msra.mxu0 %v477
        %524 = vmatprep.subr.mxu0 0.0
        %525 = vmatpush1.msra.mxu0 %v476
        %526 = vmatprep.subr.mxu0 0.0
        %527 = vmatpush2.msra.mxu0 0.0
        %528 = vmatprep.subr.mxu0 0.0
        %529 = vmatpush2.msra.mxu0 0.0
        %530 = vmatprep.subr.mxu0 0.0
        %531 = vmatpush2.msra.mxu0 0.0
        %532 = vmatprep.subr.mxu0 0.0
        %533 = vmatpush2.msra.mxu0 0.0
        %534 = vmatprep.subr.mxu0 0.0
        %535 = vmatpush2.msra.mxu0 0.0
        %536 = vmatprep.subr.mxu0 0.0
        %537 = vmatpush2.msra.mxu0 0.0
        %538 = vmatprep.subr.mxu0 0.0
        %539 = vmatpush2.msra.mxu0 0.0
        %540 = vmatprep.subr.mxu0 0.0
        %541 = vmatpush2.msra.mxu0 0.0
        %542 = vmatprep.subr.mxu0 0.0
        %543 = vmatpush2.msra.mxu0 0.0
        %544 = vmatprep.subr.mxu0 0.0
        %545 = vmatpush2.msra.mxu0 0.0
        %546 = vmatprep.subr.mxu0 0.0
        %547 = vmatpush2.msra.mxu0 0.0
        %548 = vmatprep.subr.mxu0 0.0
        %549 = vmatpush2.msra.mxu0 0.0
        %550 = vmatprep.subr.mxu0 0.0
        %551 = vmatpush2.msra.mxu0 0.0
        %552 = vmatprep.subr.mxu0 0.0
        %553 = vmatpush2.msra.mxu0 0.0
        %554 = vmatprep.subr.mxu0 0.0
        %555 = vmatpush2.msra.mxu0 0.0
        %556 = vmatprep.subr.mxu0 0.0
        %557 = vmatpush2.msra.mxu0 0.0
        %558 = vmatprep.mubr.f32.mxu0 0.0
        %559 = vmatmul.mubr.f32.gmra.mxu0 %v492
        %v560 = vpop.f32.mrf.mxu0
        %v561 = vadd.f32 %v489, %v560
        %v562 = vpop.f32.mrf.mxu0
        %563 = vdwg.mxu0
        %564 = vst.msk [vmem:[%s323] sm:$0xff] %vm331, %v561
        %s565 = sand.u32 %s225, 1
        %s566 = scalar_lea.sflag [#allocation3], %s565
        %s567 = sand.u32 %s225, 1
        %s568 = smul.addr %s567, 8
        %s569 = scalar_lea.vmem [#allocation2], %s568
        // Predicated region
        $region57: #{representation_network.1} parent=55 // pred_check
          %p570 = pneg %p235
        $region58: #{representation_network.1} parent=55 // pred_check_branch
          %572 = sbr.rel (%p570) target = $region60
        $region59: #{representation_network.1} parent=55 // pred_region
          %s574 = ssub.s32 128, 128
          %575 = vsyncadd %s566, %s574
          %s576 = smul.addr %s23, 128
          %s577 = scalar_lea.hbm %s9, %s576
          %s579 = sshll.u32 %s569, 4
          %s580 = int_to_ptr.vmem [resolvable:$true] %s579
          %582 = dma.vmem_to_hbm [thread:$0]  %s580, 128, %s577, %s566
        $region60: #{representation_network.1} parent=55 // pred_fallthru
          _
      $region56: #{representation_network.1} parent=5 // pred_fallthru
        _
      %p583 = scmp.le.s32.totalorder 2, %s18
      // Predicated region
      $region61: #{representation_network.1} parent=5 // pred_check
        %p584 = pneg %p583
      $region62: #{representation_network.1} parent=5 // pred_check_branch
        %586 = sbr.rel (%p584) target = $region64
      $region63: #{representation_network.1} parent=5 // pred_region
        %s587 = ssub.s32 %s18, 2
        // Predicated region
        $region65: #{representation_network.1} parent=63 // pred_check
          %p588 = pneg %p241
        $region66: #{representation_network.1} parent=63 // pred_check_branch
          %590 = sbr.rel (%p588) target = $region68
        $region67: #{representation_network.1} parent=63 // pred_region
          %s591 = sand.u32 %s226, 1
          %s592 = scalar_lea.sflag [#allocation3], %s591
          %s593 = sand.u32 %s226, 1
          %s594 = smul.addr %s593, 8
          %s595 = scalar_lea.vmem [#allocation2], %s594
          %596 = dma.done %s592, 128
        $region68: #{representation_network.1} parent=63 // pred_fallthru
          _
      $region64: #{representation_network.1} parent=5 // pred_fallthru
        _
    $region6: #{representation_network.1} parent=1 // loop_footer
      %s22 = sadd.s32 1, %s18
    $region7: #{representation_network.1} parent=1 // loop_footer_branch
      %17 = sbr.rel target = $region3
    $region8: #{representation_network.1} parent=1 // loop_exit
      _
    %597 = vsyncpa [#allocation3], 1
    %s598 = scalar_lea.sflag [#allocation3], 1
    %599 = vsyncpa %s598, 1

</llo_original>
